<compile_context>
chip_gen: v5e
topology: v5e:2x2
jax: 0.10.0
libtpu: 0.0.40
codegen_flags: <defaults>
</compile_context>

<pallas_src>
import functools

import jax
import jax.numpy as jnp
from jax.experimental import pallas as pl
from jax.experimental.pallas import tpu as pltpu


# ----------------------------------------------------------------------------
# Pallas kernel: dilated conv (K shifted matmuls) + BN(eval) + highway gate.
# ----------------------------------------------------------------------------
def _highway_kernel(xm_ref, xh_ref, w_ref, ms_ref, off_ref, o_ref, win_ref,
                    *, K, dilation, pad_l, tile_t):
    # xm_ref : [1, C_in, tile_t]            main time tile of padded x (bf16, NCT)
    # xh_ref : [1, C_in, halo_block]        right halo (start of the next tile)
    # w_ref  : [K, 2*O, C_in]               fused conv weights (h1 rows | h2 rows)
    # ms_ref : [2*O, 1]                     fused BN multiplier (f32)
    # off_ref: [2*O, 1]                     fused BN offset (f32)
    # o_ref  : [1, O, tile_t]               output tile (x dtype)
    # win_ref: [C_in, tile_t + halo_block]  VMEM scratch: contiguous conv window
    O = o_ref.shape[1]
    C2 = w_ref.shape[1]

    # Assemble the contiguous window [main tile | halo] once per grid step.
    win_ref[:, :tile_t] = xm_ref[0]
    win_ref[:, tile_t:] = xh_ref[0]

    # Dilated conv as K shifted matmuls on the MXU: one fused (2*O)-wide dot
    # per tap, accumulated in f32.  K is small and static -> unrolled.
    acc = jnp.zeros((C2, tile_t), jnp.float32)
    for k in range(K):
        s = k * dilation
        acc = acc + jnp.dot(w_ref[k], win_ref[:, s:s + tile_t],
                            preferred_element_type=jnp.float32)

    # BatchNorm (inference) folded into a single multiply-add per channel.
    h = acc * ms_ref[...] + off_ref[...]
    h1 = h[:O, :]                                     # gate channels
    h2 = h[O:, :]                                     # carry channels
    # activation='identity' and Dropout in eval mode are no-ops.
    p = jax.nn.sigmoid(h1)
    x_res = win_ref[:, pad_l:pad_l + tile_t].astype(jnp.float32)
    o_ref[0] = (h2 * p + x_res * (1.0 - p)).astype(o_ref.dtype)


# ----------------------------------------------------------------------------
# Wrapper: generate conv / BN parameters from the meta-embedding (tiny matmuls,
# plain JAX glue), fold the highway permutation into them, tile time, launch.
# ----------------------------------------------------------------------------
def highway_conv_block_generated(e, x, params, *, kernel_size, dilation=1,
                                 groups=1, eps=1e-8, running_mean=None,
                                 running_var=None, time_tile=2048):
    N, C_in, T = x.shape
    assert C_in % groups == 0
    O = C_in                      # highway block: input_channels == output_channels
    C2 = 2 * O                    # conv produces 2*O channels
    in_g = C_in // groups
    outg = C2 // groups           # conv output channels per group
    half = O // groups            # size of torch.chunk(h, 2*groups, dim=1) chunks
    K = kernel_size

    # 'same' padding, matching ConstantPad1d in the module.
    p = (K - 1) * dilation // 2
    pad_l, pad_r = (p, p) if K % 2 != 0 else (p, p + 1)
    halo = (K - 1) * dilation
    del pad_r  # physical right-padding below covers it with the same zeros

    # --- Conv1dGenerated: weights generated from the meta-embedding -----------
    eb = e @ params['conv_bn_w'].T + params['conv_bn_b']            # [g, bottleneck]
    kflat = eb @ params['conv_k_w'].T + params['conv_k_b']          # [g, outg*in_g*K]
    w = kflat.reshape(C2, in_g, K)                                  # torch .view(out, in//g, K)

    # Fused block-diagonal weight [K, 2*O, C_in]; the highway chunk permutation
    # is folded into the output-row ordering: rows [0,O) -> h1, rows [O,2O) -> h2.
    W = jnp.zeros((K, C2, C_in), jnp.float32)
    for g in range(groups):
        wg = jnp.transpose(w[g * outg:(g + 1) * outg], (2, 0, 1))   # [K, outg, in_g]
        W = W.at[:, g * half:(g + 1) * half,
                 g * in_g:(g + 1) * in_g].set(wg[:, :half, :])
        W = W.at[:, O + g * half:O + (g + 1) * half,
                 g * in_g:(g + 1) * in_g].set(wg[:, half:, :])
    W = W.astype(jnp.bfloat16)                                      # bf16 MXU input

    # --- BatchNorm1dGenerated (inference): fold scale / running stats / bias --
    eb2 = e @ params['bn_bn_w'].T + params['bn_bn_b']               # [g, bottleneck]
    aff = eb2 @ params['bn_a_w'].T + params['bn_a_b']               # [g, 2*outg]
    scale, bias = aff[:, :outg], aff[:, outg:]
    if running_mean is None:
        running_mean = jnp.zeros((groups, outg), jnp.float32)       # init running stats
    if running_var is None:
        running_var = jnp.ones((groups, outg), jnp.float32)
    mult = scale / jnp.sqrt(running_var + eps)
    offs = bias - running_mean * mult
    ms = jnp.concatenate([mult[:, :half].reshape(O), mult[:, half:].reshape(O)])
    off = jnp.concatenate([offs[:, :half].reshape(O), offs[:, half:].reshape(O)])
    ms = ms.reshape(C2, 1).astype(jnp.float32)
    off = off.reshape(C2, 1).astype(jnp.float32)

    # --- time tiling (NCT: channels on sublanes, time on lanes) ---------------
    halo_block = 128 * max(1, pl.cdiv(halo, 128))      # lane-aligned right halo
    tt = min(time_tile, 128 * pl.cdiv(T, 128))
    tt = halo_block * pl.cdiv(tt, halo_block)          # tile_t % halo_block == 0

    # Fit the tile into a conservative VMEM budget (v7x has only 64 MiB total).
    budget = 32 * 1024 * 1024

    def _vmem_est(t):
        dbuf = 2 * (C_in * t * 2 + C_in * halo_block * 2 + O * t * 4
                    + K * C2 * C_in * 2 + 2 * C2 * 4)   # double-buffered in/out
        scratch = C_in * (t + halo_block) * 2
        temps = 2 * C2 * t * 4 + 3 * O * t * 4          # acc/h + gate temporaries
        return dbuf + scratch + temps + (2 << 20)

    while tt > halo_block and _vmem_est(tt) > budget:
        tt = max(halo_block, ((tt // 2) // halo_block) * halo_block)
    n_t = pl.cdiv(T, tt)

    # Single fused pass over x in HBM: 'same' zero-padding + bf16 cast.
    # (No NCT<->NTC transposes anywhere.)
    L = n_t * tt + halo_block
    x_pad = jnp.pad(x, ((0, 0), (0, 0), (pad_l, L - T - pad_l))).astype(jnp.bfloat16)

    kern = functools.partial(_highway_kernel, K=K, dilation=dilation,
                             pad_l=pad_l, tile_t=tt)

    out = pl.pallas_call(
        kern,
        out_shape=jax.ShapeDtypeStruct((N, O, n_t * tt), x.dtype),
        grid=(N, n_t),
        in_specs=[
            # main time tile
            pl.BlockSpec((1, C_in, tt), lambda n, t: (n, 0, t)),
            # right halo: first halo_block columns of the next tile (same array)
            pl.BlockSpec((1, C_in, halo_block),
                         lambda n, t: (n, 0, (t + 1) * (tt // halo_block))),
            # constants: fused weights and BN multiplier / offset
            pl.BlockSpec((K, C2, C_in), lambda n, t: (0, 0, 0)),
            pl.BlockSpec((C2, 1), lambda n, t: (0, 0)),
            pl.BlockSpec((C2, 1), lambda n, t: (0, 0)),
        ],
        out_specs=pl.BlockSpec((1, O, tt), lambda n, t: (n, 0, t)),
        scratch_shapes=[pltpu.VMEM((C_in, tt + halo_block), jnp.bfloat16)],
        compiler_params=pltpu.CompilerParams(
            dimension_semantics=("parallel", "parallel"),
            vmem_limit_bytes=48 * 1024 * 1024),
    )(x_pad, x_pad, W, ms, off)

    return out[:, :, :T]


# ----------------------------------------------------------------------------
# Pure-JAX reference (mirrors the PyTorch module, eval mode) for verification.
# ----------------------------------------------------------------------------
def reference(e, x, params, *, kernel_size, dilation=1, groups=1, eps=1e-8,
              running_mean=None, running_var=None):
    N, C_in, T = x.shape
    O, C2, K = C_in, 2 * C_in, kernel_size
    in_g, outg = C_in // groups, (2 * C_in) // groups
    p = (K - 1) * dilation // 2
    pad_l, pad_r = (p, p) if K % 2 != 0 else (p, p + 1)

    eb = e @ params['conv_bn_w'].T + params['conv_bn_b']
    w = (eb @ params['conv_k_w'].T + params['conv_k_b']).reshape(C2, in_g, K)
    xp = jnp.pad(x, ((0, 0), (0, 0), (pad_l, pad_r)))
    h = jax.lax.conv_general_dilated(
        xp, w, window_strides=(1,), padding='VALID', rhs_dilation=(dilation,),
        dimension_numbers=('NCH', 'OIH', 'NCH'), feature_group_count=groups)

    eb2 = e @ params['bn_bn_w'].T + params['bn_bn_b']
    aff = eb2 @ params['bn_a_w'].T + params['bn_a_b']
    scale, bias = aff[:, :outg], aff[:, outg:]
    if running_mean is None:
        running_mean = jnp.zeros_like(scale)
    if running_var is None:
        running_var = jnp.ones_like(scale)
    mult = (scale / jnp.sqrt(running_var + eps)).reshape(-1)
    offs = (bias - running_mean * scale / jnp.sqrt(running_var + eps)).reshape(-1)
    h = h * mult[None, :, None] + offs[None, :, None]

    chunks = jnp.split(h, 2 * groups, axis=1)
    h1 = jnp.concatenate(chunks[0::2], axis=1)
    h2 = jnp.concatenate(chunks[1::2], axis=1)
    gate = jax.nn.sigmoid(h1)
    return h2 * gate + x * (1.0 - gate)


if __name__ == "__main__":
    # Small deterministic configuration.
    embedding_dim, bottleneck_dim = 8, 4
    channels, kernel_size, dilation, groups = 8, 3, 1, 2
    N, T = 2, 16

    in_g = channels // groups
    outg = (2 * channels) // groups

    key = jax.random.PRNGKey(0)
    ks = jax.random.split(key, 12)

    def lin(kw, kb, out_dim, in_dim, wscale=0.2, bscale=0.1):
        return (jax.random.normal(kw, (out_dim, in_dim), jnp.float32) * wscale,
                jax.random.normal(kb, (out_dim,), jnp.float32) * bscale)

    conv_bn_w, conv_bn_b = lin(ks[0], ks[1], bottleneck_dim, embedding_dim)
    conv_k_w, conv_k_b = lin(ks[2], ks[3], in_g * outg * kernel_size, bottleneck_dim)
    bn_bn_w, bn_bn_b = lin(ks[4], ks[5], bottleneck_dim, embedding_dim)
    bn_a_w, bn_a_b = lin(ks[6], ks[7], 2 * outg, bottleneck_dim)
    params = dict(conv_bn_w=conv_bn_w, conv_bn_b=conv_bn_b,
                  conv_k_w=conv_k_w, conv_k_b=conv_k_b,
                  bn_bn_w=bn_bn_w, bn_bn_b=bn_bn_b,
                  bn_a_w=bn_a_w, bn_a_b=bn_a_b)

    e = jax.random.normal(ks[8], (groups, embedding_dim), jnp.float32)
    x = jax.random.normal(ks[9], (N, channels, T), jnp.float32)

    out = highway_conv_block_generated(e, x, params, kernel_size=kernel_size,
                                       dilation=dilation, groups=groups)
    out = jax.block_until_ready(out)

    ref = jax.block_until_ready(
        reference(e, x, params, kernel_size=kernel_size,
                  dilation=dilation, groups=groups))

    assert out.shape == (N, channels, T)
    err = float(jnp.max(jnp.abs(out - ref)))
    # bf16 matmul inputs (f32 accumulation) -> tolerance loosened accordingly.
    assert jnp.allclose(out, ref, atol=4e-2, rtol=4e-2), f"mismatch vs reference, max_abs_err={err}"
    print("KERNEL_OK")
</pallas_src>

<mosaic_0001>
module attributes {stable_mosaic.version = 11 : i64} {
  func.func @_highway_kernel(%arg0: i32, %arg1: i32, %arg2: memref<1x8x128xbf16, #tpu.memory_space<vmem>>, %arg3: memref<1x8x128xbf16, #tpu.memory_space<vmem>>, %arg4: memref<3x16x8xbf16, #tpu.memory_space<vmem>>, %arg5: memref<16x1xf32, #tpu.memory_space<vmem>>, %arg6: memref<16x1xf32, #tpu.memory_space<vmem>>, %arg7: memref<1x8x128xf32, #tpu.memory_space<vmem>>, %arg8: memref<8x256xbf16, #tpu.memory_space<vmem>>) attributes {dimension_semantics = [#tpu.dimension_semantics<parallel>, #tpu.dimension_semantics<parallel>], iteration_bounds = array<i64: 2, 1>, scalar_prefetch = 0 : i64, scratch_operands = 1 : i64, tpu.core_type = #tpu.core_type<tc>, window_params = [{transform_indices = @transform_0, window_bounds = array<i64: 1, 8, 128>}, {transform_indices = @transform_1, window_bounds = array<i64: 1, 8, 128>}, {pipeline_mode = #tpu.pipeline_mode<synchronous>, transform_indices = @transform_2, window_bounds = array<i64: 3, 16, 8>}, {pipeline_mode = #tpu.pipeline_mode<synchronous>, transform_indices = @transform_3, window_bounds = array<i64: 16, 1>}, {pipeline_mode = #tpu.pipeline_mode<synchronous>, transform_indices = @transform_4, window_bounds = array<i64: 16, 1>}, {transform_indices = @transform_5, window_bounds = array<i64: 1, 8, 128>}]} {
    %c0 = arith.constant 0 : index
    %c0_0 = arith.constant 0 : index
    %c0_1 = arith.constant 0 : index
    %0 = vector.load %arg2[%c0, %c0_0, %c0_1] : memref<1x8x128xbf16, #tpu.memory_space<vmem>>, vector<1x8x128xbf16>
    %1 = vector.shape_cast %0 : vector<1x8x128xbf16> to vector<8x128xbf16>
    %c0_2 = arith.constant 0 : index
    %c0_3 = arith.constant 0 : index
    %2 = vector.load %arg8[%c0_2, %c0_3] : memref<8x256xbf16, #tpu.memory_space<vmem>>, vector<8x128xbf16>
    tpu.vector_store %arg8[%c0_2, %c0_3], %1 {strides = array<i32>} : memref<8x256xbf16, #tpu.memory_space<vmem>>, vector<8x128xbf16>,
    %c0_4 = arith.constant 0 : index
    %c0_5 = arith.constant 0 : index
    %c0_6 = arith.constant 0 : index
    %3 = vector.load %arg3[%c0_4, %c0_5, %c0_6] : memref<1x8x128xbf16, #tpu.memory_space<vmem>>, vector<1x8x128xbf16>
    %4 = vector.shape_cast %3 : vector<1x8x128xbf16> to vector<8x128xbf16>
    %c0_7 = arith.constant 0 : index
    %c128 = arith.constant 128 : index
    %5 = vector.load %arg8[%c0_7, %c128] : memref<8x256xbf16, #tpu.memory_space<vmem>>, vector<8x128xbf16>
    tpu.vector_store %arg8[%c0_7, %c128], %4 {strides = array<i32>} : memref<8x256xbf16, #tpu.memory_space<vmem>>, vector<8x128xbf16>,
    %cst = arith.constant 0.000000e+00 : f32
    %6 = vector.broadcast %cst : f32 to vector<16x128xf32>
    %c0_8 = arith.constant 0 : index
    %c0_9 = arith.constant 0 : index
    %c0_10 = arith.constant 0 : index
    %7 = vector.load %arg4[%c0_8, %c0_9, %c0_10] : memref<3x16x8xbf16, #tpu.memory_space<vmem>>, vector<1x16x8xbf16>
    %8 = vector.shape_cast %7 : vector<1x16x8xbf16> to vector<16x8xbf16>
    %c0_11 = arith.constant 0 : index
    %c0_12 = arith.constant 0 : index
    %9 = vector.load %arg8[%c0_11, %c0_12] : memref<8x256xbf16, #tpu.memory_space<vmem>>, vector<8x128xbf16>
    %cst_13 = arith.constant dense<0.000000e+00> : vector<16x128xf32>
    %10 = tpu.matmul %8, %9, %cst_13 {dimension_numbers = #tpu.dot_dimension_numbers<[1], [0], [0], [1], [0, 0, 1, 1], [], []>} : vector<16x8xbf16>, vector<8x128xbf16>, vector<16x128xf32> -> vector<16x128xf32>
    %11 = arith.addf %6, %10 : vector<16x128xf32>
    %c1 = arith.constant 1 : index
    %c0_14 = arith.constant 0 : index
    %c0_15 = arith.constant 0 : index
    %12 = vector.load %arg4[%c1, %c0_14, %c0_15] : memref<3x16x8xbf16, #tpu.memory_space<vmem>>, vector<1x16x8xbf16>
    %13 = vector.shape_cast %12 : vector<1x16x8xbf16> to vector<16x8xbf16>
    %c0_16 = arith.constant 0 : index
    %c1_17 = arith.constant 1 : index
    %14 = vector.load %arg8[%c0_16, %c1_17] : memref<8x256xbf16, #tpu.memory_space<vmem>>, vector<8x128xbf16>
    %cst_18 = arith.constant dense<0.000000e+00> : vector<16x128xf32>
    %15 = tpu.matmul %13, %14, %cst_18 {dimension_numbers = #tpu.dot_dimension_numbers<[1], [0], [0], [1], [0, 0, 1, 1], [], []>} : vector<16x8xbf16>, vector<8x128xbf16>, vector<16x128xf32> -> vector<16x128xf32>
    %16 = arith.addf %11, %15 : vector<16x128xf32>
    %c2 = arith.constant 2 : index
    %c0_19 = arith.constant 0 : index
    %c0_20 = arith.constant 0 : index
    %17 = vector.load %arg4[%c2, %c0_19, %c0_20] : memref<3x16x8xbf16, #tpu.memory_space<vmem>>, vector<1x16x8xbf16>
    %18 = vector.shape_cast %17 : vector<1x16x8xbf16> to vector<16x8xbf16>
    %c0_21 = arith.constant 0 : index
    %c2_22 = arith.constant 2 : index
    %19 = vector.load %arg8[%c0_21, %c2_22] : memref<8x256xbf16, #tpu.memory_space<vmem>>, vector<8x128xbf16>
    %cst_23 = arith.constant dense<0.000000e+00> : vector<16x128xf32>
    %20 = tpu.matmul %18, %19, %cst_23 {dimension_numbers = #tpu.dot_dimension_numbers<[1], [0], [0], [1], [0, 0, 1, 1], [], []>} : vector<16x8xbf16>, vector<8x128xbf16>, vector<16x128xf32> -> vector<16x128xf32>
    %21 = arith.addf %16, %20 : vector<16x128xf32>
    %c0_24 = arith.constant 0 : index
    %c0_25 = arith.constant 0 : index
    %22 = vector.load %arg5[%c0_24, %c0_25] : memref<16x1xf32, #tpu.memory_space<vmem>>, vector<16x1xf32>
    %23 = vector.broadcast %22 : vector<16x1xf32> to vector<16x128xf32>
    %24 = arith.mulf %21, %23 : vector<16x128xf32>
    %c0_26 = arith.constant 0 : index
    %c0_27 = arith.constant 0 : index
    %25 = vector.load %arg6[%c0_26, %c0_27] : memref<16x1xf32, #tpu.memory_space<vmem>>, vector<16x1xf32>
    %26 = vector.broadcast %25 : vector<16x1xf32> to vector<16x128xf32>
    %27 = arith.addf %24, %26 : vector<16x128xf32>
    %28 = vector.extract_strided_slice %27 {offsets = [0, 0], sizes = [8, 128], strides = [1, 1]} : vector<16x128xf32> to vector<8x128xf32>
    %29 = vector.extract_strided_slice %27 {offsets = [8, 0], sizes = [8, 128], strides = [1, 1]} : vector<16x128xf32> to vector<8x128xf32>
    %30 = arith.negf %28 : vector<8x128xf32>
    %31 = math.exp %30 : vector<8x128xf32>
    %cst_28 = arith.constant 1.000000e+00 : f32
    %32 = vector.broadcast %cst_28 : f32 to vector<8x128xf32>
    %33 = arith.addf %32, %31 : vector<8x128xf32>
    %34 = arith.divf %32, %33 : vector<8x128xf32>
    %c0_29 = arith.constant 0 : index
    %c1_30 = arith.constant 1 : index
    %35 = vector.load %arg8[%c0_29, %c1_30] : memref<8x256xbf16, #tpu.memory_space<vmem>>, vector<8x128xbf16>
    %36 = arith.extf %35 : vector<8x128xbf16> to vector<8x128xf32>
    %37 = arith.mulf %29, %34 : vector<8x128xf32>
    %cst_31 = arith.constant 1.000000e+00 : f32
    %38 = vector.broadcast %cst_31 : f32 to vector<8x128xf32>
    %39 = arith.subf %38, %34 : vector<8x128xf32>
    %40 = arith.mulf %36, %39 : vector<8x128xf32>
    %41 = arith.addf %37, %40 : vector<8x128xf32>
    %c0_32 = arith.constant 0 : index
    %c0_33 = arith.constant 0 : index
    %c0_34 = arith.constant 0 : index
    %42 = vector.load %arg7[%c0_32, %c0_33, %c0_34] : memref<1x8x128xf32, #tpu.memory_space<vmem>>, vector<1x8x128xf32>
    %43 = vector.shape_cast %42 : vector<1x8x128xf32> to vector<8x128xf32>
    %44 = vector.shape_cast %41 : vector<8x128xf32> to vector<1x8x128xf32>
    tpu.vector_store %arg7[%c0_32, %c0_33, %c0_34], %44 {strides = array<i32>} : memref<1x8x128xf32, #tpu.memory_space<vmem>>, vector<1x8x128xf32>,
    return
  }
  func.func @transform_0(%arg0: i32, %arg1: i32) -> (i32, i32, i32) {
    %c0_i32 = arith.constant 0 : i32
    %c0_i32_0 = arith.constant 0 : i32
    return %arg0, %c0_i32, %arg1 : i32, i32, i32
  }
  func.func @transform_1(%arg0: i32, %arg1: i32) -> (i32, i32, i32) {
    %c1_i32 = arith.constant 1 : i32
    %0 = arith.addi %arg1, %c1_i32 : i32
    %c1_i32_0 = arith.constant 1 : i32
    %1 = arith.muli %0, %c1_i32_0 : i32
    %c0_i32 = arith.constant 0 : i32
    %c0_i32_1 = arith.constant 0 : i32
    return %arg0, %c0_i32, %1 : i32, i32, i32
  }
  func.func @transform_2(%arg0: i32, %arg1: i32) -> (i32, i32, i32) {
    %c0_i32 = arith.constant 0 : i32
    %c0_i32_0 = arith.constant 0 : i32
    %c0_i32_1 = arith.constant 0 : i32
    %c0_i32_2 = arith.constant 0 : i32
    return %c0_i32, %c0_i32_0, %c0_i32_1 : i32, i32, i32
  }
  func.func @transform_3(%arg0: i32, %arg1: i32) -> (i32, i32) {
    %c0_i32 = arith.constant 0 : i32
    %c0_i32_0 = arith.constant 0 : i32
    %c0_i32_1 = arith.constant 0 : i32
    return %c0_i32, %c0_i32_0 : i32, i32
  }
  func.func @transform_4(%arg0: i32, %arg1: i32) -> (i32, i32) {
    %c0_i32 = arith.constant 0 : i32
    %c0_i32_0 = arith.constant 0 : i32
    %c0_i32_1 = arith.constant 0 : i32
    return %c0_i32, %c0_i32_0 : i32, i32
  }
  func.func @transform_5(%arg0: i32, %arg1: i32) -> (i32, i32, i32) {
    %c0_i32 = arith.constant 0 : i32
    %c0_i32_0 = arith.constant 0 : i32
    return %arg0, %c0_i32, %arg1 : i32, i32, i32
  }
}

</mosaic_0001>

<llo_original>
// kernel: tpu_custom_call.1
$region0: #{tpu_custom_call.1}
  #allocation0 [shape = 'u32[]', space=smem, size = 0x4, offset = 0x4, fixed_abs, tag = 'smem constant byte address 0x4 - core index']
  #allocation1 [shape = 'u32[72,128]{1,0:T(1,128)}', space=vmem, size = 0x9000, scoped, tag = 'internal scratch']
  #allocation2 [shape = 'bf16[8,256]{1,0:T(8,128)(2,1)}', space=vmem, size = 0x1000, scoped, tag = 'scratch operand']
  %s0 = inlined_call_operand.vmem [shape: bf16[2,8,256], index: 0, kind: input, shape index: {}]
  %s1 = inlined_call_operand.vmem [shape: bf16[2,8,256], index: 1, kind: input, shape index: {}]
  %s2 = inlined_call_operand.vmem [shape: bf16[3,16,8], index: 2, kind: input, shape index: {}]
  %s3 = inlined_call_operand.vmem [shape: f32[16,1], index: 3, kind: input, shape index: {}]
  %s4 = inlined_call_operand.vmem [shape: f32[16,1], index: 4, kind: input, shape index: {}]
  %s5 = inlined_call_operand.hbm [shape: f32[2,8,128], index: 5, kind: output, shape index: {}]
  %s6 = sld [smem:[#allocation0]]
  $region53: #{tpu_custom_call.1} parent=0
    _
  %s8 = ssub.s32 1, %s6
  %s9 = scalar_select 0, %s8, %s6
  $region1: #{tpu_custom_call.1} parent=0
    #allocation3 [shape = 'u8[8192]{0}', space=vmem, size = 0x2000, scoped, tag = 'output window, operand 0']
    #allocation4 [shape = 's32[2]{0}', space=sflag, size = 0x8, scoped, tag = 'scoped memory for tpu_custom_call.1']
    %10 = vsyncpa [#allocation4], 0
    %s11 = scalar_lea.sflag [#allocation4], 1
    %12 = vsyncpa %s11, 0
    loop: start=0, step=1, limit=4
    $region2: #{tpu_custom_call.1} parent=1 // loop_pre_header
      _
    $region3: #{tpu_custom_call.1} parent=1 // loop_header
      %s14 = sphi 0, %s18
      %p15 = scmp.ge.s32.totalorder %s14, 4
      %s21 = sphi 0, %s33
      %s22 = sphi 0, %s29
      %s23 = sphi 0, %s21
      %s24 = sphi 0, %s22
      %s25 = sphi 0, %s23
      %s26 = sphi 0, %s24
      %s38 = sphi 0, %s40
      %s41 = sphi 0, %s38
      %s42 = sphi 0, %s41
      %s58 = sphi 0, %s42
      %s68 = sphi 0, %s70
      %s71 = sphi 0, %s68
      %s72 = sphi 0, %s71
      %s88 = sphi 0, %s72
      %s92 = sphi 0, %s92
      %s94 = sphi 0, %s92
      %s95 = sphi 0, %s94
      %s109 = sphi 0, %s95
      %s113 = sphi 0, %s113
      %s115 = sphi 0, %s113
      %s116 = sphi 0, %s115
      %s130 = sphi 0, %s116
      %s134 = sphi 0, %s134
      %s136 = sphi 0, %s134
      %s137 = sphi 0, %s136
      %s151 = sphi 0, %s137
      %s159 = sphi 0, %s161
      %s162 = sphi 0, %s159
      %s163 = sphi 0, %s162
      %s179 = sphi 0, %s163
    $region4: #{tpu_custom_call.1} parent=1 // loop_header_branch
      %17 = sbr.rel (%p15) target = $region8
    $region5: #{tpu_custom_call.1} parent=1 // loop_body
      %s19 = ssub.s32 %s14, 1
      %s20 = ssub.s32 %s14, 2
      %s27 = sadd.s32 1, %s22
      %p28 = scmp.ge.s32.totalorder %s27, 1
      %s29 = scalar_select %p28, 0, %s27
      %s30 = sadd.s32 1, %s21
      %s31 = scalar_select %p28, %s30, %s21
      %p32 = scmp.ge.s32.totalorder %s31, 2
      %s33 = scalar_select %p32, 0, %s31
      %s34 = ssub.s32 %s21, %s33
      %s35 = ssub.s32 %s22, %s29
      %s36 = sor.u32 %s34, %s35
      %p37 = scmp.eq.s32.totalorder %s36, 0
      %s39 = sadd.s32 %s38, 1
      %s40 = scalar_select %p37, %s38, %s39
      %p43 = pneg %p37
      %p44 = scmp.eq.s32.totalorder %s14, 1
      %p45 = por %p43, %p44
      %p46 = scmp.ne.s32.totalorder %s38, %s41
      %p47 = scmp.eq.s32.totalorder %s14, 0
      %p48 = por %p46, %p47
      %p49 = scmp.ne.s32.totalorder %s38, %s41
      %p50 = scmp.eq.s32.totalorder %s19, 1
      %p51 = por %p49, %p50
      %p52 = scmp.ne.s32.totalorder %s41, %s42
      %p53 = scmp.eq.s32.totalorder %s19, 0
      %p54 = por %p52, %p53
      %p55 = scmp.ne.s32.totalorder %s41, %s42
      %p56 = scmp.eq.s32.totalorder %s20, 1
      %p57 = por %p55, %p56
      %p59 = scmp.ne.s32.totalorder %s42, %s58
      %p60 = scmp.eq.s32.totalorder %s20, 0
      %p61 = por %p59, %p60
      %s62 = sadd.s32 %s22, 1
      %s63 = sadd.s32 %s29, 1
      %s64 = ssub.s32 %s21, %s33
      %s65 = ssub.s32 %s62, %s63
      %s66 = sor.u32 %s64, %s65
      %p67 = scmp.eq.s32.totalorder %s66, 0
      %s69 = sadd.s32 %s68, 1
      %s70 = scalar_select %p67, %s68, %s69
      %p73 = pneg %p67
      %p74 = scmp.eq.s32.totalorder %s14, 1
      %p75 = por %p73, %p74
      %p76 = scmp.ne.s32.totalorder %s68, %s71
      %p77 = scmp.eq.s32.totalorder %s14, 0
      %p78 = por %p76, %p77
      %p79 = scmp.ne.s32.totalorder %s68, %s71
      %p80 = scmp.eq.s32.totalorder %s19, 1
      %p81 = por %p79, %p80
      %p82 = scmp.ne.s32.totalorder %s71, %s72
      %p83 = scmp.eq.s32.totalorder %s19, 0
      %p84 = por %p82, %p83
      %p85 = scmp.ne.s32.totalorder %s71, %s72
      %p86 = scmp.eq.s32.totalorder %s20, 1
      %p87 = por %p85, %p86
      %p89 = scmp.ne.s32.totalorder %s72, %s88
      %p90 = scmp.eq.s32.totalorder %s20, 0
      %p91 = por %p89, %p90
      %s93 = sadd.s32 %s92, 1
      %p96 = scmp.eq.s32.totalorder %s14, 1
      %p97 = scmp.ne.s32.totalorder %s92, %s94
      %p98 = scmp.eq.s32.totalorder %s14, 0
      %p99 = por %p97, %p98
      %p100 = scmp.ne.s32.totalorder %s92, %s94
      %p101 = scmp.eq.s32.totalorder %s19, 1
      %p102 = por %p100, %p101
      %p103 = scmp.ne.s32.totalorder %s94, %s95
      %p104 = scmp.eq.s32.totalorder %s19, 0
      %p105 = por %p103, %p104
      %p106 = scmp.ne.s32.totalorder %s94, %s95
      %p107 = scmp.eq.s32.totalorder %s20, 1
      %p108 = por %p106, %p107
      %p110 = scmp.ne.s32.totalorder %s95, %s109
      %p111 = scmp.eq.s32.totalorder %s20, 0
      %p112 = por %p110, %p111
      %s114 = sadd.s32 %s113, 1
      %p117 = scmp.eq.s32.totalorder %s14, 1
      %p118 = scmp.ne.s32.totalorder %s113, %s115
      %p119 = scmp.eq.s32.totalorder %s14, 0
      %p120 = por %p118, %p119
      %p121 = scmp.ne.s32.totalorder %s113, %s115
      %p122 = scmp.eq.s32.totalorder %s19, 1
      %p123 = por %p121, %p122
      %p124 = scmp.ne.s32.totalorder %s115, %s116
      %p125 = scmp.eq.s32.totalorder %s19, 0
      %p126 = por %p124, %p125
      %p127 = scmp.ne.s32.totalorder %s115, %s116
      %p128 = scmp.eq.s32.totalorder %s20, 1
      %p129 = por %p127, %p128
      %p131 = scmp.ne.s32.totalorder %s116, %s130
      %p132 = scmp.eq.s32.totalorder %s20, 0
      %p133 = por %p131, %p132
      %s135 = sadd.s32 %s134, 1
      %p138 = scmp.eq.s32.totalorder %s14, 1
      %p139 = scmp.ne.s32.totalorder %s134, %s136
      %p140 = scmp.eq.s32.totalorder %s14, 0
      %p141 = por %p139, %p140
      %p142 = scmp.ne.s32.totalorder %s134, %s136
      %p143 = scmp.eq.s32.totalorder %s19, 1
      %p144 = por %p142, %p143
      %p145 = scmp.ne.s32.totalorder %s136, %s137
      %p146 = scmp.eq.s32.totalorder %s19, 0
      %p147 = por %p145, %p146
      %p148 = scmp.ne.s32.totalorder %s136, %s137
      %p149 = scmp.eq.s32.totalorder %s20, 1
      %p150 = por %p148, %p149
      %p152 = scmp.ne.s32.totalorder %s137, %s151
      %p153 = scmp.eq.s32.totalorder %s20, 0
      %p154 = por %p152, %p153
      %s155 = ssub.s32 %s21, %s33
      %s156 = ssub.s32 %s22, %s29
      %s157 = sor.u32 %s155, %s156
      %p158 = scmp.eq.s32.totalorder %s157, 0
      %s160 = sadd.s32 %s159, 1
      %s161 = scalar_select %p158, %s159, %s160
      %p164 = pneg %p158
      %p165 = scmp.eq.s32.totalorder %s14, 1
      %p166 = por %p164, %p165
      %p167 = scmp.ne.s32.totalorder %s159, %s162
      %p168 = scmp.eq.s32.totalorder %s14, 0
      %p169 = por %p167, %p168
      %p170 = scmp.ne.s32.totalorder %s159, %s162
      %p171 = scmp.eq.s32.totalorder %s19, 1
      %p172 = por %p170, %p171
      %p173 = scmp.ne.s32.totalorder %s162, %s163
      %p174 = scmp.eq.s32.totalorder %s19, 0
      %p175 = por %p173, %p174
      %p176 = scmp.ne.s32.totalorder %s162, %s163
      %p177 = scmp.eq.s32.totalorder %s20, 1
      %p178 = por %p176, %p177
      %p180 = scmp.ne.s32.totalorder %s163, %s179
      %p181 = scmp.eq.s32.totalorder %s20, 0
      %p182 = por %p180, %p181
      %p183 = scmp.le.s32.totalorder 1, %s14
      %p184 = scmp.lt.s32.totalorder %s14, 3
      %p185 = pnand %p183, %p184
      %p186 = pneg %p185
      // Predicated region
      $region9: #{tpu_custom_call.1} parent=5 // pred_check
        _
      $region10: #{tpu_custom_call.1} parent=5 // pred_check_branch
        %188 = sbr.rel (%p185) target = $region12
      $region11: #{tpu_custom_call.1} parent=5 // pred_region
        %s189 = ssub.s32 %s14, 1
        // Predicated region
        $region13: #{tpu_custom_call.1} parent=11 // pred_check
          %p190 = pneg %p105
        $region14: #{tpu_custom_call.1} parent=11 // pred_check_branch
          %192 = sbr.rel (%p190) target = $region16
        $region15: #{tpu_custom_call.1} parent=11 // pred_region
          _
        $region16: #{tpu_custom_call.1} parent=11 // pred_fallthru
          _
        // Predicated region
        $region17: #{tpu_custom_call.1} parent=11 // pred_check
          %p193 = pneg %p126
        $region18: #{tpu_custom_call.1} parent=11 // pred_check_branch
          %195 = sbr.rel (%p193) target = $region20
        $region19: #{tpu_custom_call.1} parent=11 // pred_region
          _
        $region20: #{tpu_custom_call.1} parent=11 // pred_fallthru
          _
        // Predicated region
        $region21: #{tpu_custom_call.1} parent=11 // pred_check
          %p196 = pneg %p147
        $region22: #{tpu_custom_call.1} parent=11 // pred_check_branch
          %198 = sbr.rel (%p196) target = $region24
        $region23: #{tpu_custom_call.1} parent=11 // pred_region
          _
        $region24: #{tpu_custom_call.1} parent=11 // pred_fallthru
          _
      $region12: #{tpu_custom_call.1} parent=5 // pred_fallthru
        _
      %p199 = scmp.lt.s32.totalorder %s14, 2
      // Predicated region
      $region25: #{tpu_custom_call.1} parent=5 // pred_check
        %p200 = pneg %p199
      $region26: #{tpu_custom_call.1} parent=5 // pred_check_branch
        %202 = sbr.rel (%p200) target = $region28
      $region27: #{tpu_custom_call.1} parent=5 // pred_region
        // Predicated region
        $region29: #{tpu_custom_call.1} parent=27 // pred_check
          %p203 = pneg %p48
        $region30: #{tpu_custom_call.1} parent=27 // pred_check_branch
          %205 = sbr.rel (%p203) target = $region32
        $region31: #{tpu_custom_call.1} parent=27 // pred_region
          %p206 = scmp.lt.s32.totalorder %s21, 1
          %s207 = scalar_select %p206, %s21, 1
          %p208 = scmp.lt.s32.totalorder %s22, 1
          %s209 = scalar_select %p208, %s22, 1
          %s210 = smul.addr %s207, 2
          %s211 = sadd.s32 %s209, %s210
          %s212 = smul.addr %s211, 4
          %s213 = scalar_lea.vmem %s0, %s212
        $region32: #{tpu_custom_call.1} parent=27 // pred_fallthru
          _
        // Predicated region
        $region33: #{tpu_custom_call.1} parent=27 // pred_check
          %p214 = pneg %p78
        $region34: #{tpu_custom_call.1} parent=27 // pred_check_branch
          %216 = sbr.rel (%p214) target = $region36
        $region35: #{tpu_custom_call.1} parent=27 // pred_region
          %s217 = sadd.s32 %s22, 1
          %p218 = scmp.lt.s32.totalorder %s21, 1
          %s219 = scalar_select %p218, %s21, 1
          %p220 = scmp.lt.s32.totalorder %s217, 1
          %s221 = scalar_select %p220, %s217, 1
          %s222 = smul.addr %s219, 2
          %s223 = sadd.s32 %s221, %s222
          %s224 = smul.addr %s223, 4
          %s225 = scalar_lea.vmem %s1, %s224
          %s226 = sadd.s32 %s22, 1
        $region36: #{tpu_custom_call.1} parent=27 // pred_fallthru
          _
      $region28: #{tpu_custom_call.1} parent=5 // pred_fallthru
        _
      %p227 = scmp.le.s32.totalorder 1, %s14
      %p228 = scmp.lt.s32.totalorder %s14, 3
      %p229 = pnand %p227, %p228
      %p230 = pneg %p229
      // Predicated region
      $region37: #{tpu_custom_call.1} parent=5 // pred_check
        _
      $region38: #{tpu_custom_call.1} parent=5 // pred_check_branch
        %232 = sbr.rel (%p229) target = $region40
      $region39: #{tpu_custom_call.1} parent=5 // pred_region
        %s233 = ssub.s32 %s14, 1
        %p234 = scmp.lt.s32.totalorder %s23, 1
        %s235 = scalar_select %p234, %s23, 1
        %p236 = scmp.lt.s32.totalorder %s24, 1
        %s237 = scalar_select %p236, %s24, 1
        %s238 = smul.addr %s235, 2
        %s239 = sadd.s32 %s237, %s238
        %s240 = smul.addr %s239, 4
        %s241 = scalar_lea.vmem %s0, %s240
        %p242 = pneg %p54
        %p243 = pneg %p51
        %s244 = sadd.s32 %s24, 1
        %p245 = scmp.lt.s32.totalorder %s23, 1
        %s246 = scalar_select %p245, %s23, 1
        %p247 = scmp.lt.s32.totalorder %s244, 1
        %s248 = scalar_select %p247, %s244, 1
        %s249 = smul.addr %s246, 2
        %s250 = sadd.s32 %s248, %s249
        %s251 = smul.addr %s250, 4
        %s252 = scalar_lea.vmem %s1, %s251
        %p253 = pneg %p84
        %p254 = pneg %p81
        %p255 = pneg %p105
        %p256 = pneg %p102
        %p257 = pneg %p126
        %p258 = pneg %p123
        %p259 = pneg %p147
        %p260 = pneg %p144
        %p261 = pneg %p175
        %p262 = pneg %p172
        %s263 = sand.u32 %s162, 1
        %s264 = scalar_lea.sflag [#allocation4], %s263
        %s265 = sand.u32 %s162, 1
        %s266 = smul.addr %s265, 8
        %s267 = scalar_lea.vmem [#allocation3], %s266
        %p268 = scmp.lt.s32.totalorder %s23, 1
        %s269 = scalar_select %p268, %s23, 1
        %p270 = scmp.lt.s32.totalorder %s24, 1
        %s271 = scalar_select %p270, %s24, 1
        %s272 = smul.addr %s269, 2
        %s273 = sadd.s32 %s271, %s272
        %s274 = smul.addr %s273, 4
        %s275 = scalar_lea.vmem %s0, %s274
        %s276 = sadd.s32 %s24, 1
        %p277 = scmp.lt.s32.totalorder %s23, 1
        %s278 = scalar_select %p277, %s23, 1
        %p279 = scmp.lt.s32.totalorder %s276, 1
        %s280 = scalar_select %p279, %s276, 1
        %s281 = smul.addr %s278, 2
        %s282 = sadd.s32 %s280, %s281
        %s283 = smul.addr %s282, 4
        %s284 = scalar_lea.vmem %s1, %s283
        %s285 = sadd.s32 %s24, 1
        %v287 = vld [vmem:[%s275] sm:$0xf]
        %288 = vst [vmem:[#allocation2] sm:$0xf] %v287
        %v289 = vld [vmem:[%s284] sm:$0xf]
        %290 = vst [vmem:[#allocation2 + $0x4] sm:$0xf] %v289
        %v291 = vld [vmem:[%s2] sm:$0xf]
        %v292 = vld [vmem:[%s2 + $0x4] sm:$0xf]
        %v293 = vld [vmem:[#allocation2] sm:$0xf]
        %s294 = scalar_lea.vmem %s2, 8
        %v295 = vld [vmem:[%s294] sm:$0xf]
        %v296 = vld [vmem:[%s294 + $0x4] sm:$0xf]
        %v297 = vld [vmem:[#allocation2] sm:$0xff]
        %v300 = vunpack.c.l.b16 %v295
        %v301 = vunpack.c.l.b16 %v296
        %v302 = vpack.c.b16 %v301, %v300
        %v304 = vunpack.c.l.b16 %v297
        %v305 = vunpack.c.h.b16 %v297
        %v306 = vpack.c.b16 %v304, %v304
        %v307 = vpack.c.b16 %v305, %v305
        %308 = vrot.lane.b32.xlu0 %v306, 127
        %v309 = vpop.permute.xlu0 %308
        %310 = vrot.lane.b32.xlu0 %v307, 127
        %v311 = vpop.permute.xlu0 %310
        %vm312 = vcmask 1039360
        %v313 = vsel %vm312, %v309, %v311
        %vm314 = vcmask 64512
        %v316 = vsel %vm314, %v302, 0
        %vm318 = vcmask 1043456
        %v320 = vsel %vm318, %v313, 0
        %322 = vmatpush.bf16.msra.mxu0 0
        %323 = vmatpush.bf16.msra.mxu0 0
        %324 = vmatpush.bf16.msra.mxu0 0
        %325 = vmatpush.bf16.msra.mxu0 0
        %326 = vmatpush.bf16.msra.mxu0 0
        %327 = vmatpush.bf16.msra.mxu0 0
        %328 = vmatpush.bf16.msra.mxu0 0
        %329 = vmatpush.bf16.msra.mxu0 %v320
        %330 = vmatmul.bf16.gmra.mxu0 %v316
        %v331 = vpop.f32.mrf.mxu0
        %v332 = vadd.f32 0.0, %v331
        %v333 = vpop.f32.mrf.mxu0
        %v334 = vadd.f32 0.0, %v333
        %335 = vdwg.mxu0
        %v338 = vunpack.c.l.b16 %v291
        %v339 = vunpack.c.l.b16 %v292
        %v340 = vpack.c.b16 %v339, %v338
        %v342 = vsel %vm314, %v340, 0
        %v345 = vsel %vm318, %v293, 0
        %347 = vmatpush.bf16.msra.mxu0 0
        %348 = vmatpush.bf16.msra.mxu0 0
        %349 = vmatpush.bf16.msra.mxu0 0
        %350 = vmatpush.bf16.msra.mxu0 0
        %351 = vmatpush.bf16.msra.mxu0 0
        %352 = vmatpush.bf16.msra.mxu0 0
        %353 = vmatpush.bf16.msra.mxu0 0
        %354 = vmatpush.bf16.msra.mxu0 %v345
        %355 = vmatmul.bf16.gmra.mxu0 %v342
        %v356 = vpop.f32.mrf.mxu0
        %v357 = vadd.f32 %v332, %v356
        %v358 = vpop.f32.mrf.mxu0
        %v359 = vadd.f32 %v334, %v358
        %360 = vdwg.mxu0
        %s361 = scalar_lea.vmem %s2, 16
        %v362 = vld [vmem:[%s361] sm:$0xf]
        %v363 = vld [vmem:[%s361 + $0x4] sm:$0xf]
        %v366 = vunpack.c.l.b16 %v362
        %v367 = vunpack.c.l.b16 %v363
        %v368 = vpack.c.b16 %v367, %v366
        %369 = vrot.lane.b32.xlu0 %v306, 126
        %v370 = vpop.permute.xlu0 %369
        %371 = vrot.lane.b32.xlu0 %v307, 126
        %v372 = vpop.permute.xlu0 %371
        %vm373 = vcmask 1031168
        %v374 = vsel %vm373, %v370, %v372
        %v376 = vsel %vm314, %v368, 0
        %v379 = vsel %vm318, %v374, 0
        %381 = vmatpush.bf16.msra.mxu0 0
        %382 = vmatpush.bf16.msra.mxu0 0
        %383 = vmatpush.bf16.msra.mxu0 0
        %384 = vmatpush.bf16.msra.mxu0 0
        %385 = vmatpush.bf16.msra.mxu0 0
        %386 = vmatpush.bf16.msra.mxu0 0
        %387 = vmatpush.bf16.msra.mxu0 0
        %388 = vmatpush.bf16.msra.mxu0 %v379
        %389 = vmatmul.bf16.gmra.mxu0 %v376
        %v390 = vpop.f32.mrf.mxu0
        %v391 = vadd.f32 0.0, %v390
        %v392 = vpop.f32.mrf.mxu0
        %v393 = vadd.f32 0.0, %v392
        %394 = vdwg.mxu0
        %v395 = vadd.f32 %v357, %v391
        %v396 = vadd.f32 %v359, %v393
        %v397 = vld [vmem:[%s3] sm:$0xff]
        %v398 = vld [vmem:[%s3 + $0x8] sm:$0xff]
        %400 = vset.pattern.permute.xlu0 0
        %401 = vperm.xlu0 %400, %v397
        %v402 = vpop.permute.xlu0 %401
        %405 = vset.pattern.permute.xlu0 0
        %406 = vperm.xlu0 %405, %v398
        %v407 = vpop.permute.xlu0 %406
        %v409 = vmul.f32 %v395, %v402
        %v410 = vmul.f32 %v396, %v407
        %v411 = vld [vmem:[%s4] sm:$0xff]
        %v412 = vld [vmem:[%s4 + $0x8] sm:$0xff]
        %414 = vset.pattern.permute.xlu0 0
        %415 = vperm.xlu0 %414, %v411
        %v416 = vpop.permute.xlu0 %415
        %419 = vset.pattern.permute.xlu0 0
        %420 = vperm.xlu0 %419, %v412
        %v421 = vpop.permute.xlu0 %420
        %v423 = vadd.f32 %v409, %v416
        %v424 = vadd.f32 %v410, %v421
        %v425 = vxor.u32 %v423, 2147483648
        %v426 = vmul.f32 %v425, 1.442695
        %v427 = vpow.pop %v426
        %v428 = vadd.f32 %v427, 1.0
        %v429 = vrcp.pop %v428
        %v430 = vmul.f32 %v428, %v429
        %v431 = vsub.f32 1.0, %v430
        %v432 = vmul.f32 %v429, %v431
        %v433 = vadd.f32 %v429, %v432
        %vm434 = vweird.f32 %v428
        %vm435 = vweird.f32 %v429
        %vm436 = vmor %vm434, %vm435
        %v437 = vsel %vm436, %v429, %v433
        %v438 = vand.u32 2147483647, %v428
        %vm439 = vcmp.eq.f32.partialorder %v438, 8.507059e+37
        %v440 = vand.u32 %v428, 2147483648
        %v441 = vor.u32 1.1754944e-38, %v440
        %v442 = vsel %vm439, %v441, %v437
        %v443 = vmul.f32 1.0, %v442
        %v444 = vunpack.c.l.bf16 %v297
        %v445 = vunpack.c.h.bf16 %v297
        %v446 = vmul.f32 %v424, %v443
        %v447 = vsub.f32 1.0, %v443
        %449 = vrot.lane.b32.xlu0 %v447, 1
        %v450 = vpop.permute.xlu0 %449
        %v452 = vmul.f32 %v444, %v450
        %v453 = vmul.f32 %v445, %v450
        %456 = vrot.lane.b32.xlu0 %v452, 127
        %v457 = vpop.permute.xlu0 %456
        %458 = vrot.lane.b32.xlu0 %v453, 127
        %v459 = vpop.permute.xlu0 %458
        %vm460 = vcmask 1039360
        %v461 = vsel %vm460, %v457, %v459
        %v463 = vadd.f32 %v446, %v461
        %464 = vst [vmem:[%s267] sm:$0xff] %v463
        %s465 = sand.u32 %s162, 1
        %s466 = scalar_lea.sflag [#allocation4], %s465
        %s467 = sand.u32 %s162, 1
        %s468 = smul.addr %s467, 8
        %s469 = scalar_lea.vmem [#allocation3], %s468
        // Predicated region
        $region41: #{tpu_custom_call.1} parent=39 // pred_check
          %p470 = pneg %p172
        $region42: #{tpu_custom_call.1} parent=39 // pred_check_branch
          %472 = sbr.rel (%p470) target = $region44
        $region43: #{tpu_custom_call.1} parent=39 // pred_region
          %474 = vsyncadd %s466, 0
          %s475 = sadd.s32 %s24, %s23
          %s476 = smul.addr %s475, 8
          %s477 = scalar_lea.hbm %s5, %s476
          %s479 = sshll.u32 %s469, 4
          %s480 = int_to_ptr.vmem [resolvable:$true] %s479
          %s481 = sshll.u32 %s477, 4
          %s482 = int_to_ptr.hbm [resolvable:$true] %s481
          %484 = dma.vmem_to_hbm [thread:$0]  %s480, 128, %s482, %s466
        $region44: #{tpu_custom_call.1} parent=39 // pred_fallthru
          _
      $region40: #{tpu_custom_call.1} parent=5 // pred_fallthru
        _
      %p485 = scmp.le.s32.totalorder 2, %s14
      // Predicated region
      $region45: #{tpu_custom_call.1} parent=5 // pred_check
        %p486 = pneg %p485
      $region46: #{tpu_custom_call.1} parent=5 // pred_check_branch
        %488 = sbr.rel (%p486) target = $region48
      $region47: #{tpu_custom_call.1} parent=5 // pred_region
        %s489 = ssub.s32 %s14, 2
        // Predicated region
        $region49: #{tpu_custom_call.1} parent=47 // pred_check
          %p490 = pneg %p178
        $region50: #{tpu_custom_call.1} parent=47 // pred_check_branch
          %492 = sbr.rel (%p490) target = $region52
        $region51: #{tpu_custom_call.1} parent=47 // pred_region
          %s493 = sand.u32 %s163, 1
          %s494 = scalar_lea.sflag [#allocation4], %s493
          %s495 = sand.u32 %s163, 1
          %s496 = smul.addr %s495, 8
          %s497 = scalar_lea.vmem [#allocation3], %s496
          %499 = dma.done %s494, 128
        $region52: #{tpu_custom_call.1} parent=47 // pred_fallthru
          _
      $region48: #{tpu_custom_call.1} parent=5 // pred_fallthru
        _
    $region6: #{tpu_custom_call.1} parent=1 // loop_footer
      %s18 = sadd.s32 1, %s14
    $region7: #{tpu_custom_call.1} parent=1 // loop_footer_branch
      %13 = sbr.rel target = $region3
    $region8: #{tpu_custom_call.1} parent=1 // loop_exit
      _
    %500 = vsyncpa [#allocation4], 1
    %s501 = scalar_lea.sflag [#allocation4], 1
    %502 = vsyncpa %s501, 1

</llo_original>
